<compile_context>
chip_gen: v7x
topology: tpu7x:2x2x1
jax: 0.10.0
libtpu: 0.0.40
codegen_flags: <defaults>
</compile_context>

<pallas_src>
import functools

import jax
import jax.numpy as jnp
from jax.experimental import pallas as pl
from jax.experimental.pallas import tpu as pltpu


def _round_up(n, m):
    return ((n + m - 1) // m) * m


def _num_tensorcores():
    # v7x has 2 TensorCores per chip; v5e/v6e have 1.
    try:
        kind = jax.devices()[0].device_kind.lower()
    except Exception:
        return 1
    return 2 if "v7" in kind else 1


def mlp_head_kernel(x_ref, w1_ref, b1_ref, w2_ref, b2_ref, w3_ref, b3_ref,
                    o_ref, *, n_classes):
    """Fused Linear -> ReLU -> Linear -> ReLU -> Linear on one batch tile."""
    # MXU operands in the weight dtype (f32 or bf16), f32 accumulation via
    # preferred_element_type; bias add + ReLU stay f32 on the VPU.
    x = x_ref[...].astype(w1_ref.dtype)

    h1 = jnp.dot(x, w1_ref[...], preferred_element_type=jnp.float32) + b1_ref[...]
    h1 = jnp.maximum(h1, 0.0).astype(w2_ref.dtype)

    h2 = jnp.dot(h1, w2_ref[...], preferred_element_type=jnp.float32) + b2_ref[...]
    h2 = jnp.maximum(h2, 0.0).astype(w3_ref.dtype)

    out = jnp.dot(h2, w3_ref[...], preferred_element_type=jnp.float32) + b3_ref[...]
    # Store only the real classes: a (bm, 10) masked store writes ~12.8x fewer bytes
    # than a lane-padded (bm, 128) f32 slab plus an external slice pass over it.
    o_ref[...] = out[:, :n_classes].astype(o_ref.dtype)


def prepare_classifier_head_params(w1, b1, w2, b2, w3, b3, compute_dtype=None):
    """One-time weight preparation (transpose / zero-pad / cast).

    Hoisted out of the per-call path (perf review): call once, reuse for every
    forward pass.  Weights use PyTorch convention (out_features, in_features).
    """
    F = w1.shape[1]
    H1, H2, C = w1.shape[0], w2.shape[0], w3.shape[0]
    if compute_dtype is None:
        # Small in_features -> HBM/overhead bound; bf16 MXU operands buy nothing and
        # cost precision.  Large in_features -> bf16 halves w1 traffic / residency.
        compute_dtype = jnp.float32 if F <= 128 else jnp.bfloat16

    H1p, H2p, Cp = _round_up(H1, 128), _round_up(H2, 128), _round_up(C, 128)

    w1t = jnp.pad(w1.T, ((0, 0), (0, H1p - H1))).astype(compute_dtype)
    w2t = jnp.pad(w2.T, ((0, H1p - H1), (0, H2p - H2))).astype(compute_dtype)
    w3t = jnp.pad(w3.T, ((0, H2p - H2), (0, Cp - C))).astype(compute_dtype)
    b1r = jnp.pad(b1, (0, H1p - H1)).astype(jnp.float32).reshape(1, H1p)
    b2r = jnp.pad(b2, (0, H2p - H2)).astype(jnp.float32).reshape(1, H2p)
    b3r = jnp.pad(b3, (0, Cp - C)).astype(jnp.float32).reshape(1, Cp)
    return (w1t, b1r, w2t, b2r, w3t, b3r)


def _const_spec(shape, single_buffer):
    # Constant index_map -> block DMA'd once and resident across the batch axis.
    # Buffered(1) drops the (pointless) second buffer of a never-changing block; only
    # requested when the weights are large enough for double-buffering to matter.
    if single_buffer and hasattr(pl, "Buffered"):
        try:
            return pl.BlockSpec(shape, lambda i: (0, 0),
                                pipeline_mode=pl.Buffered(1))
        except TypeError:
            pass
    return pl.BlockSpec(shape, lambda i: (0, 0))


@functools.partial(jax.jit, static_argnames=("n_classes", "block_m"))
def classifier_head(x, w1t, b1r, w2t, b2r, w3t, b3r, *, n_classes=10,
                    block_m=1024):
    """x: (B, in_features); remaining args from prepare_classifier_head_params."""
    B, F = x.shape
    H1p, H2p, Cp = w1t.shape[1], w2t.shape[1], w3t.shape[1]
    assert w1t.shape[0] == F and w2t.shape[0] == H1p and w3t.shape[0] == H2p
    assert n_classes <= Cp

    # Large batch tile (overhead-bound kernel); cap to round_up(B, 8) so toy batches
    # don't over-allocate.  On v7x cap further so grid >= 2 and the "parallel" batch
    # axis can shard across both TensorCores.
    bm = min(block_m, _round_up(B, 8))
    if _num_tensorcores() >= 2:
        bm = min(bm, max(8, _round_up(pl.cdiv(B, 2), 8)))
    grid = (pl.cdiv(B, bm),)

    w_itemsize = jnp.dtype(w1t.dtype).itemsize
    x_itemsize = jnp.dtype(x.dtype).itemsize
    weight_bytes = (F * H1p + H1p * H2p + H2p * Cp) * w_itemsize
    bias_bytes = (H1p + H2p + Cp) * 4
    single_buffer_weights = weight_bytes > (2 << 20)  # large-F / v7x VMEM case

    # Advisory scheduling hint for XLA around this small custom call.
    cost = pl.CostEstimate(
        flops=int(2 * B * (F * H1p + H1p * H2p + H2p * n_classes)),
        transcendentals=0,
        bytes_accessed=int(B * F * x_itemsize + B * n_classes * x_itemsize
                           + weight_bytes + bias_bytes),
    )

    # Explicit scoped-VMEM request: actual footprint (x/out double buffers, weights,
    # f32 activations) with headroom, clamped well under every generation's VMEM.
    vmem_est = (2 * bm * F * x_itemsize
                + 2 * bm * n_classes * x_itemsize
                + 2 * (weight_bytes + bias_bytes)
                + bm * (H1p + H2p + Cp) * 4)
    vmem_limit = int(min(max(2 * vmem_est, 32 * 1024 * 1024), 56 * 1024 * 1024))

    kernel = functools.partial(mlp_head_kernel, n_classes=n_classes)

    return pl.pallas_call(
        kernel,
        out_shape=jax.ShapeDtypeStruct((B, n_classes), x.dtype),
        grid_spec=pltpu.PrefetchScalarGridSpec(
            num_scalar_prefetch=0,
            grid=grid,
            in_specs=[
                pl.BlockSpec((bm, F), lambda i: (i, 0)),       # x batch tile
                _const_spec((F, H1p), single_buffer_weights),   # w1
                _const_spec((1, H1p), single_buffer_weights),   # b1
                _const_spec((H1p, H2p), single_buffer_weights), # w2
                _const_spec((1, H2p), single_buffer_weights),   # b2
                _const_spec((H2p, Cp), single_buffer_weights),  # w3
                _const_spec((1, Cp), single_buffer_weights),    # b3
            ],
            out_specs=pl.BlockSpec((bm, n_classes), lambda i: (i, 0)),
        ),
        compiler_params=pltpu.CompilerParams(
            dimension_semantics=("parallel",),
            vmem_limit_bytes=vmem_limit,
        ),
        cost_estimate=cost,
    )(x, w1t, b1r, w2t, b2r, w3t, b3r)


def _init_linear(key, out_features, in_features, dtype=jnp.float32):
    # Deterministic synthetic init (PyTorch-like uniform fan-in bound).
    kw, kb = jax.random.split(key)
    bound = 1.0 / (in_features ** 0.5)
    w = jax.random.uniform(kw, (out_features, in_features), dtype, -bound, bound)
    b = jax.random.uniform(kb, (out_features,), dtype, -bound, bound)
    return w, b


if __name__ == "__main__":
    key = jax.random.PRNGKey(0)
    kx, k1, k2, k3 = jax.random.split(key, 4)

    B, in_features = 2, 32
    x = jax.random.normal(kx, (B, in_features), jnp.float32)

    w1, b1 = _init_linear(k1, 384, in_features)
    w2, b2 = _init_linear(k2, 192, 384)
    w3, b3 = _init_linear(k3, 10, 192)

    def ref_fn(xx):
        h1 = jnp.maximum(xx @ w1.T + b1, 0.0)
        h2 = jnp.maximum(h1 @ w2.T + b2, 0.0)
        return h2 @ w3.T + b3

    # One-time weight prep (hoisted out of the per-call path).  F=32 <= 128 so the
    # auto compute_dtype is f32 -> logits match the PyTorch f32 module tightly.
    params = prepare_classifier_head_params(w1, b1, w2, b2, w3, b3)
    out = jax.block_until_ready(classifier_head(x, *params))
    ref = ref_fn(x)
    assert out.shape == (B, 10), out.shape
    assert jnp.allclose(out, ref, atol=1e-4, rtol=1e-4), "f32 mismatch vs reference"

    # Coverage: ragged batch (non-multiple of the tile / of 8) + explicit bf16 MXU
    # operands (f32 accumulation -> small bounded precision delta).
    B2 = 100
    x2 = jax.random.normal(jax.random.PRNGKey(1), (B2, in_features), jnp.float32)
    params_bf16 = prepare_classifier_head_params(
        w1, b1, w2, b2, w3, b3, compute_dtype=jnp.bfloat16)
    out2 = jax.block_until_ready(classifier_head(x2, *params_bf16))
    ref2 = ref_fn(x2)
    assert out2.shape == (B2, 10), out2.shape
    assert jnp.allclose(out2, ref2, atol=3e-2, rtol=3e-2), "bf16 mismatch vs reference"

    print("KERNEL_OK")
</pallas_src>

<mosaic_0001>
module attributes {stable_mosaic.version = 11 : i64} {
  func.func @mlp_head_kernel(%arg0: i32, %arg1: memref<8x32xf32, #tpu.memory_space<vmem>>, %arg2: memref<32x384xf32, #tpu.memory_space<vmem>>, %arg3: memref<1x384xf32, #tpu.memory_space<vmem>>, %arg4: memref<384x256xf32, #tpu.memory_space<vmem>>, %arg5: memref<1x256xf32, #tpu.memory_space<vmem>>, %arg6: memref<256x128xf32, #tpu.memory_space<vmem>>, %arg7: memref<1x128xf32, #tpu.memory_space<vmem>>, %arg8: memref<8x10xf32, #tpu.memory_space<vmem>>) attributes {dimension_semantics = [#tpu.dimension_semantics<parallel>], iteration_bounds = array<i64: 1>, scalar_prefetch = 0 : i64, scratch_operands = 0 : i64, tpu.core_type = #tpu.core_type<tc>, window_params = [{transform_indices = @transform_0, window_bounds = array<i64: 8, 32>}, {pipeline_mode = #tpu.pipeline_mode<synchronous>, transform_indices = @transform_1, window_bounds = array<i64: 32, 384>}, {pipeline_mode = #tpu.pipeline_mode<synchronous>, transform_indices = @transform_2, window_bounds = array<i64: 1, 384>}, {pipeline_mode = #tpu.pipeline_mode<synchronous>, transform_indices = @transform_3, window_bounds = array<i64: 384, 256>}, {pipeline_mode = #tpu.pipeline_mode<synchronous>, transform_indices = @transform_4, window_bounds = array<i64: 1, 256>}, {pipeline_mode = #tpu.pipeline_mode<synchronous>, transform_indices = @transform_5, window_bounds = array<i64: 256, 128>}, {pipeline_mode = #tpu.pipeline_mode<synchronous>, transform_indices = @transform_6, window_bounds = array<i64: 1, 128>}, {transform_indices = @transform_7, window_bounds = array<i64: 8, 10>}]} {
    %c0 = arith.constant 0 : index
    %c0_0 = arith.constant 0 : index
    %0 = vector.load %arg1[%c0, %c0_0] : memref<8x32xf32, #tpu.memory_space<vmem>>, vector<8x32xf32>
    %c0_1 = arith.constant 0 : index
    %c0_2 = arith.constant 0 : index
    %1 = vector.load %arg2[%c0_1, %c0_2] : memref<32x384xf32, #tpu.memory_space<vmem>>, vector<32x384xf32>
    %cst = arith.constant dense<0.000000e+00> : vector<8x384xf32>
    %2 = tpu.matmul %0, %1, %cst {dimension_numbers = #tpu.dot_dimension_numbers<[1], [0], [0], [1], [0, 0, 1, 1], [], []>} : vector<8x32xf32>, vector<32x384xf32>, vector<8x384xf32> -> vector<8x384xf32>
    %c0_3 = arith.constant 0 : index
    %c0_4 = arith.constant 0 : index
    %3 = vector.load %arg3[%c0_3, %c0_4] : memref<1x384xf32, #tpu.memory_space<vmem>>, vector<1x384xf32>
    %4 = vector.broadcast %3 : vector<1x384xf32> to vector<8x384xf32>
    %5 = arith.addf %2, %4 : vector<8x384xf32>
    %cst_5 = arith.constant 0.000000e+00 : f32
    %6 = vector.broadcast %cst_5 : f32 to vector<8x384xf32>
    %7 = arith.maximumf %5, %6 : vector<8x384xf32>
    %c0_6 = arith.constant 0 : index
    %c0_7 = arith.constant 0 : index
    %8 = vector.load %arg4[%c0_6, %c0_7] : memref<384x256xf32, #tpu.memory_space<vmem>>, vector<384x256xf32>
    %cst_8 = arith.constant dense<0.000000e+00> : vector<8x256xf32>
    %9 = tpu.matmul %7, %8, %cst_8 {dimension_numbers = #tpu.dot_dimension_numbers<[1], [0], [0], [1], [0, 0, 1, 1], [], []>} : vector<8x384xf32>, vector<384x256xf32>, vector<8x256xf32> -> vector<8x256xf32>
    %c0_9 = arith.constant 0 : index
    %c0_10 = arith.constant 0 : index
    %10 = vector.load %arg5[%c0_9, %c0_10] : memref<1x256xf32, #tpu.memory_space<vmem>>, vector<1x256xf32>
    %11 = vector.broadcast %10 : vector<1x256xf32> to vector<8x256xf32>
    %12 = arith.addf %9, %11 : vector<8x256xf32>
    %cst_11 = arith.constant 0.000000e+00 : f32
    %13 = vector.broadcast %cst_11 : f32 to vector<8x256xf32>
    %14 = arith.maximumf %12, %13 : vector<8x256xf32>
    %c0_12 = arith.constant 0 : index
    %c0_13 = arith.constant 0 : index
    %15 = vector.load %arg6[%c0_12, %c0_13] : memref<256x128xf32, #tpu.memory_space<vmem>>, vector<256x128xf32>
    %cst_14 = arith.constant dense<0.000000e+00> : vector<8x128xf32>
    %16 = tpu.matmul %14, %15, %cst_14 {dimension_numbers = #tpu.dot_dimension_numbers<[1], [0], [0], [1], [0, 0, 1, 1], [], []>} : vector<8x256xf32>, vector<256x128xf32>, vector<8x128xf32> -> vector<8x128xf32>
    %c0_15 = arith.constant 0 : index
    %c0_16 = arith.constant 0 : index
    %17 = vector.load %arg7[%c0_15, %c0_16] : memref<1x128xf32, #tpu.memory_space<vmem>>, vector<1x128xf32>
    %18 = vector.broadcast %17 : vector<1x128xf32> to vector<8x128xf32>
    %19 = arith.addf %16, %18 : vector<8x128xf32>
    %20 = vector.extract_strided_slice %19 {offsets = [0, 0], sizes = [8, 10], strides = [1, 1]} : vector<8x128xf32> to vector<8x10xf32>
    %c0_17 = arith.constant 0 : index
    %c0_18 = arith.constant 0 : index
    %21 = vector.load %arg8[%c0_17, %c0_18] : memref<8x10xf32, #tpu.memory_space<vmem>>, vector<8x10xf32>
    tpu.vector_store %arg8[%c0_17, %c0_18], %20 {strides = array<i32>} : memref<8x10xf32, #tpu.memory_space<vmem>>, vector<8x10xf32>,
    return
  }
  func.func @transform_0(%arg0: i32) -> (i32, i32) {
    %c0_i32 = arith.constant 0 : i32
    %c0_i32_0 = arith.constant 0 : i32
    return %arg0, %c0_i32 : i32, i32
  }
  func.func @transform_1(%arg0: i32) -> (i32, i32) {
    %c0_i32 = arith.constant 0 : i32
    %c0_i32_0 = arith.constant 0 : i32
    %c0_i32_1 = arith.constant 0 : i32
    return %c0_i32, %c0_i32_0 : i32, i32
  }
  func.func @transform_2(%arg0: i32) -> (i32, i32) {
    %c0_i32 = arith.constant 0 : i32
    %c0_i32_0 = arith.constant 0 : i32
    %c0_i32_1 = arith.constant 0 : i32
    return %c0_i32, %c0_i32_0 : i32, i32
  }
  func.func @transform_3(%arg0: i32) -> (i32, i32) {
    %c0_i32 = arith.constant 0 : i32
    %c0_i32_0 = arith.constant 0 : i32
    %c0_i32_1 = arith.constant 0 : i32
    return %c0_i32, %c0_i32_0 : i32, i32
  }
  func.func @transform_4(%arg0: i32) -> (i32, i32) {
    %c0_i32 = arith.constant 0 : i32
    %c0_i32_0 = arith.constant 0 : i32
    %c0_i32_1 = arith.constant 0 : i32
    return %c0_i32, %c0_i32_0 : i32, i32
  }
  func.func @transform_5(%arg0: i32) -> (i32, i32) {
    %c0_i32 = arith.constant 0 : i32
    %c0_i32_0 = arith.constant 0 : i32
    %c0_i32_1 = arith.constant 0 : i32
    return %c0_i32, %c0_i32_0 : i32, i32
  }
  func.func @transform_6(%arg0: i32) -> (i32, i32) {
    %c0_i32 = arith.constant 0 : i32
    %c0_i32_0 = arith.constant 0 : i32
    %c0_i32_1 = arith.constant 0 : i32
    return %c0_i32, %c0_i32_0 : i32, i32
  }
  func.func @transform_7(%arg0: i32) -> (i32, i32) {
    %c0_i32 = arith.constant 0 : i32
    %c0_i32_0 = arith.constant 0 : i32
    return %arg0, %c0_i32 : i32, i32
  }
}

</mosaic_0001>

<llo_original>
// kernel: classifier_head.1
$region0: #{classifier_head.1}
  #allocation0 [shape = 'u32[]', space=smem, size = 0x4, offset = 0x4, fixed_abs, tag = 'smem constant byte address 0x4 - core index']
  #allocation1 [shape = 'u32[144,128]{1,0:T(1,128)}', space=vmem, size = 0x12000, scoped, tag = 'internal scratch']
  %s0 = inlined_call_operand.hbm [shape: f32[2,32], index: 0, kind: input, shape index: {}]
  %s1 = inlined_call_operand.hbm [shape: f32[32,384], index: 1, kind: input, shape index: {}]
  %s2 = inlined_call_operand.vmem [shape: f32[1,384], index: 2, kind: input, shape index: {}]
  %s3 = inlined_call_operand.hbm [shape: f32[384,256], index: 3, kind: input, shape index: {}]
  %s4 = inlined_call_operand.vmem [shape: f32[1,256], index: 4, kind: input, shape index: {}]
  %s5 = inlined_call_operand.hbm [shape: f32[256,128], index: 5, kind: input, shape index: {}]
  %s6 = inlined_call_operand.vmem [shape: f32[1,128], index: 6, kind: input, shape index: {}]
  %s7 = inlined_call_operand.hbm [shape: f32[2,10], index: 7, kind: output, shape index: {}]
  %s8 = sld [smem:[#allocation0]]
  $region54: #{classifier_head.1} parent=0
    _
  %s10 = ssub.s32 1, %s8
  %s11 = scalar_select 0, %s10, %s8
  $region1: #{classifier_head.1} parent=0
    #allocation2 [shape = 'u8[4096]{0}', space=vmem, size = 0x1000, scoped, tag = 'input window, operand 0, single buffered']
    #allocation3 [shape = 's32[1]{0}', space=sflag, size = 0x4, scoped, tag = 'scoped memory for classifier_head.1']
    #allocation4 [shape = 's32[1]{0}', space=sflag, size = 0x4, scoped, tag = 'scoped memory for classifier_head.1']
    #allocation5 [shape = 'u8[49152]{0}', space=vmem, size = 0xc000, scoped, tag = 'input window, operand 1, single buffered']
    #allocation6 [shape = 's32[1]{0}', space=sflag, size = 0x4, scoped, tag = 'scoped memory for classifier_head.1']
    #allocation7 [shape = 'u8[393216]{0}', space=vmem, size = 0x60000, scoped, tag = 'input window, operand 3, single buffered']
    #allocation8 [shape = 'u8[131072]{0}', space=vmem, size = 0x20000, scoped, tag = 'input window, operand 5, single buffered']
    #allocation9 [shape = 's32[1]{0}', space=sflag, size = 0x4, scoped, tag = 'scoped memory for classifier_head.1']
    #allocation10 [shape = 'u8[4096]{0}', space=vmem, size = 0x1000, scoped, tag = 'output window, operand 0, single buffered']
    %12 = vsyncpa [#allocation3], 0
    %13 = vsyncpa [#allocation6], 0
    %14 = vsyncpa [#allocation9], 0
    %15 = vsyncpa [#allocation4], 0
    // Predicated region
    $region2: #{classifier_head.1} parent=1 // pred_check
      _
    $region3: #{classifier_head.1} parent=1 // pred_check_branch
      %17 = sbr.rel (0) target = $region5
    $region4: #{classifier_head.1} parent=1 // pred_region
      %s19 = ssub.s32 128, 32
      %20 = vsyncadd [#allocation3], %s19
      %s21 = sshll.u32 [#allocation2], 4
      %s22 = int_to_ptr.vmem [resolvable:$true] %s21
      %27 = dma.hbm_to_vmem [thread:$0]  %s0, 32, %s22, [#allocation3], 32, 32, 2
    $region5: #{classifier_head.1} parent=1 // pred_fallthru
      _
    // Predicated region
    $region6: #{classifier_head.1} parent=1 // pred_check
      _
    $region7: #{classifier_head.1} parent=1 // pred_check_branch
      %29 = sbr.rel (0) target = $region9
    $region8: #{classifier_head.1} parent=1 // pred_region
      %s31 = ssub.s32 1536, 1536
      %32 = vsyncadd [#allocation6], %s31
      %s33 = sshll.u32 [#allocation5], 4
      %s34 = int_to_ptr.vmem [resolvable:$true] %s33
      %39 = dma.hbm_to_vmem [thread:$0]  %s1, 1536, %s34, [#allocation6], 384, 384, 24
    $region9: #{classifier_head.1} parent=1 // pred_fallthru
      _
    // Predicated region
    $region10: #{classifier_head.1} parent=1 // pred_check
      _
    $region11: #{classifier_head.1} parent=1 // pred_check_branch
      %41 = sbr.rel (0) target = $region13
    $region12: #{classifier_head.1} parent=1 // pred_region
      _
    $region13: #{classifier_head.1} parent=1 // pred_fallthru
      _
    // Predicated region
    $region14: #{classifier_head.1} parent=1 // pred_check
      _
    $region15: #{classifier_head.1} parent=1 // pred_check_branch
      %43 = sbr.rel (0) target = $region17
    $region16: #{classifier_head.1} parent=1 // pred_region
      %s45 = ssub.s32 12288, 12288
      %46 = vsyncadd [#allocation6], %s45
      %s47 = sshll.u32 [#allocation7], 4
      %s48 = int_to_ptr.vmem [resolvable:$true] %s47
      %53 = dma.hbm_to_vmem [thread:$0]  %s3, 12288, %s48, [#allocation6], 256, 256, 16
    $region17: #{classifier_head.1} parent=1 // pred_fallthru
      _
    // Predicated region
    $region18: #{classifier_head.1} parent=1 // pred_check
      _
    $region19: #{classifier_head.1} parent=1 // pred_check_branch
      %55 = sbr.rel (0) target = $region21
    $region20: #{classifier_head.1} parent=1 // pred_region
      _
    $region21: #{classifier_head.1} parent=1 // pred_fallthru
      _
    // Predicated region
    $region22: #{classifier_head.1} parent=1 // pred_check
      _
    $region23: #{classifier_head.1} parent=1 // pred_check_branch
      %57 = sbr.rel (0) target = $region25
    $region24: #{classifier_head.1} parent=1 // pred_region
      %s59 = ssub.s32 4096, 4096
      %60 = vsyncadd [#allocation9], %s59
      %s61 = sshll.u32 [#allocation8], 4
      %s62 = int_to_ptr.vmem [resolvable:$true] %s61
      %67 = dma.hbm_to_vmem [thread:$0]  %s5, 4096, %s62, [#allocation9], 128, 128, 8
    $region25: #{classifier_head.1} parent=1 // pred_fallthru
      _
    // Predicated region
    $region26: #{classifier_head.1} parent=1 // pred_check
      _
    $region27: #{classifier_head.1} parent=1 // pred_check_branch
      %69 = sbr.rel (0) target = $region29
    $region28: #{classifier_head.1} parent=1 // pred_region
      _
    $region29: #{classifier_head.1} parent=1 // pred_fallthru
      _
    // Predicated region
    $region30: #{classifier_head.1} parent=1 // pred_check
      _
    $region31: #{classifier_head.1} parent=1 // pred_check_branch
      %71 = sbr.rel (0) target = $region33
    $region32: #{classifier_head.1} parent=1 // pred_region
      %72 = dma.done [#allocation3], 128
    $region33: #{classifier_head.1} parent=1 // pred_fallthru
      _
    // Predicated region
    $region34: #{classifier_head.1} parent=1 // pred_check
      _
    $region35: #{classifier_head.1} parent=1 // pred_check_branch
      %74 = sbr.rel (0) target = $region37
    $region36: #{classifier_head.1} parent=1 // pred_region
      %75 = dma.done [#allocation6], 1536
    $region37: #{classifier_head.1} parent=1 // pred_fallthru
      _
    // Predicated region
    $region38: #{classifier_head.1} parent=1 // pred_check
      _
    $region39: #{classifier_head.1} parent=1 // pred_check_branch
      %77 = sbr.rel (0) target = $region41
    $region40: #{classifier_head.1} parent=1 // pred_region
      %78 = dma.done [#allocation6], 12288
    $region41: #{classifier_head.1} parent=1 // pred_fallthru
      _
    // Predicated region
    $region42: #{classifier_head.1} parent=1 // pred_check
      _
    $region43: #{classifier_head.1} parent=1 // pred_check_branch
      %80 = sbr.rel (0) target = $region45
    $region44: #{classifier_head.1} parent=1 // pred_region
      %81 = dma.done [#allocation9], 4096
    $region45: #{classifier_head.1} parent=1 // pred_fallthru
      _
    %v82 = vld [vmem:[#allocation2] sm:$0xff]
    %v83 = vld [vmem:[#allocation5] sm:$0xff]
    %v84 = vld [vmem:[#allocation5 + $0x8] sm:$0xff]
    %v85 = vld [vmem:[#allocation5 + $0x10] sm:$0xff]
    %v86 = vld [vmem:[#allocation5 + $0x18] sm:$0xff]
    %v87 = vld [vmem:[#allocation5 + $0x20] sm:$0xff]
    %v88 = vld [vmem:[#allocation5 + $0x28] sm:$0xff]
    %v89 = vld [vmem:[#allocation5 + $0x30] sm:$0xff]
    %v90 = vld [vmem:[#allocation5 + $0x38] sm:$0xff]
    %v91 = vld [vmem:[#allocation5 + $0x40] sm:$0xff]
    %v92 = vld [vmem:[#allocation5 + $0x48] sm:$0xff]
    %v93 = vld [vmem:[#allocation5 + $0x50] sm:$0xff]
    %v94 = vld [vmem:[#allocation5 + $0x58] sm:$0xff]
    %v95 = vld [vmem:[%s2] sm:$0x7]
    %v97 = vlaneseq
    %v98 = vshrl.u32 %v97, 7
    %v99 = vsub.s32 0, %v98
    %v100 = vrot.slane %v95, %v99
    %v101 = vlaneseq
    %v102 = vshrl.u32 %v101, 7
    %v103 = vsub.s32 1, %v102
    %v104 = vrot.slane %v95, %v103
    %v105 = vlaneseq
    %v106 = vshrl.u32 %v105, 7
    %v107 = vsub.s32 2, %v106
    %v108 = vrot.slane %v95, %v107
    %vm112 = vcmask 261120
    %v114 = vsel %vm112, %v82, 0
    %116 = vmatprep.subr.mxu0 %v84
    %117 = vmatpush1.msra.mxu0 %v83
    %118 = vmatprep.subr.mxu0 %v87
    %119 = vmatpush1.msra.mxu0 %v86
    %120 = vmatprep.subr.mxu0 %v90
    %121 = vmatpush1.msra.mxu0 %v89
    %122 = vmatprep.subr.mxu0 %v93
    %123 = vmatpush1.msra.mxu0 %v92
    %124 = vmatprep.subr.mxu0 0.0
    %125 = vmatpush1.msra.mxu0 0.0
    %126 = vmatprep.subr.mxu0 0.0
    %127 = vmatpush1.msra.mxu0 0.0
    %128 = vmatprep.subr.mxu0 0.0
    %129 = vmatpush1.msra.mxu0 0.0
    %130 = vmatprep.subr.mxu0 0.0
    %131 = vmatpush1.msra.mxu0 0.0
    %132 = vmatprep.subr.mxu0 0.0
    %133 = vmatpush1.msra.mxu0 0.0
    %134 = vmatprep.subr.mxu0 0.0
    %135 = vmatpush1.msra.mxu0 0.0
    %136 = vmatprep.subr.mxu0 0.0
    %137 = vmatpush1.msra.mxu0 0.0
    %138 = vmatprep.subr.mxu0 0.0
    %139 = vmatpush1.msra.mxu0 0.0
    %140 = vmatprep.subr.mxu0 0.0
    %141 = vmatpush1.msra.mxu0 0.0
    %142 = vmatprep.subr.mxu0 0.0
    %143 = vmatpush1.msra.mxu0 0.0
    %144 = vmatprep.subr.mxu0 0.0
    %145 = vmatpush1.msra.mxu0 0.0
    %146 = vmatprep.subr.mxu0 0.0
    %147 = vmatpush1.msra.mxu0 0.0
    %148 = vmatprep.subr.mxu0 0.0
    %149 = vmatpush1.msra.mxu0 0.0
    %150 = vmatprep.subr.mxu0 0.0
    %151 = vmatpush1.msra.mxu0 0.0
    %152 = vmatprep.subr.mxu0 0.0
    %153 = vmatpush1.msra.mxu0 0.0
    %154 = vmatprep.subr.mxu0 0.0
    %155 = vmatpush1.msra.mxu0 0.0
    %156 = vmatprep.subr.mxu0 0.0
    %157 = vmatpush1.msra.mxu0 0.0
    %158 = vmatprep.subr.mxu0 0.0
    %159 = vmatpush1.msra.mxu0 0.0
    %160 = vmatprep.subr.mxu0 0.0
    %161 = vmatpush1.msra.mxu0 0.0
    %162 = vmatprep.subr.mxu0 0.0
    %163 = vmatpush1.msra.mxu0 0.0
    %164 = vmatprep.subr.mxu0 0.0
    %165 = vmatpush1.msra.mxu0 0.0
    %166 = vmatprep.subr.mxu0 0.0
    %167 = vmatpush1.msra.mxu0 0.0
    %168 = vmatprep.subr.mxu0 0.0
    %169 = vmatpush1.msra.mxu0 0.0
    %170 = vmatprep.subr.mxu0 0.0
    %171 = vmatpush1.msra.mxu0 0.0
    %172 = vmatprep.subr.mxu0 0.0
    %173 = vmatpush1.msra.mxu0 0.0
    %174 = vmatprep.subr.mxu0 0.0
    %175 = vmatpush1.msra.mxu0 0.0
    %176 = vmatprep.subr.mxu0 0.0
    %177 = vmatpush1.msra.mxu0 0.0
    %178 = vmatprep.subr.mxu0 0.0
    %179 = vmatpush1.msra.mxu0 0.0
    %180 = vmatprep.mubr.f32.mxu0 0.0
    %181 = vmatmul.mubr.f32.gmra.mrb[0].mxu0 %v114
    %v182 = vpop.f32.mrb[0].mxu0
    %v183 = vadd.f32 %v100, %v182
    %v184 = vpop.f32.mrb[0].mxu0
    %v185 = vadd.f32 %v104, %v184
    %186 = vdwg.mxu0
    %187 = vmatprep.subr.mxu0 0.0
    %188 = vmatpush1.msra.mxu0 %v85
    %189 = vmatprep.subr.mxu0 0.0
    %190 = vmatpush1.msra.mxu0 %v88
    %191 = vmatprep.subr.mxu0 0.0
    %192 = vmatpush1.msra.mxu0 %v91
    %193 = vmatprep.subr.mxu0 0.0
    %194 = vmatpush1.msra.mxu0 %v94
    %195 = vmatprep.subr.mxu0 0.0
    %196 = vmatpush1.msra.mxu0 0.0
    %197 = vmatprep.subr.mxu0 0.0
    %198 = vmatpush1.msra.mxu0 0.0
    %199 = vmatprep.subr.mxu0 0.0
    %200 = vmatpush1.msra.mxu0 0.0
    %201 = vmatprep.subr.mxu0 0.0
    %202 = vmatpush1.msra.mxu0 0.0
    %203 = vmatprep.subr.mxu0 0.0
    %204 = vmatpush1.msra.mxu0 0.0
    %205 = vmatprep.subr.mxu0 0.0
    %206 = vmatpush1.msra.mxu0 0.0
    %207 = vmatprep.subr.mxu0 0.0
    %208 = vmatpush1.msra.mxu0 0.0
    %209 = vmatprep.subr.mxu0 0.0
    %210 = vmatpush1.msra.mxu0 0.0
    %211 = vmatprep.subr.mxu0 0.0
    %212 = vmatpush1.msra.mxu0 0.0
    %213 = vmatprep.subr.mxu0 0.0
    %214 = vmatpush1.msra.mxu0 0.0
    %215 = vmatprep.subr.mxu0 0.0
    %216 = vmatpush1.msra.mxu0 0.0
    %217 = vmatprep.subr.mxu0 0.0
    %218 = vmatpush1.msra.mxu0 0.0
    %219 = vmatprep.subr.mxu0 0.0
    %220 = vmatpush1.msra.mxu0 0.0
    %221 = vmatprep.subr.mxu0 0.0
    %222 = vmatpush1.msra.mxu0 0.0
    %223 = vmatprep.subr.mxu0 0.0
    %224 = vmatpush1.msra.mxu0 0.0
    %225 = vmatprep.subr.mxu0 0.0
    %226 = vmatpush1.msra.mxu0 0.0
    %227 = vmatprep.subr.mxu0 0.0
    %228 = vmatpush1.msra.mxu0 0.0
    %229 = vmatprep.subr.mxu0 0.0
    %230 = vmatpush1.msra.mxu0 0.0
    %231 = vmatprep.subr.mxu0 0.0
    %232 = vmatpush1.msra.mxu0 0.0
    %233 = vmatprep.subr.mxu0 0.0
    %234 = vmatpush1.msra.mxu0 0.0
    %235 = vmatprep.subr.mxu0 0.0
    %236 = vmatpush1.msra.mxu0 0.0
    %237 = vmatprep.subr.mxu0 0.0
    %238 = vmatpush1.msra.mxu0 0.0
    %239 = vmatprep.subr.mxu0 0.0
    %240 = vmatpush1.msra.mxu0 0.0
    %241 = vmatprep.subr.mxu0 0.0
    %242 = vmatpush1.msra.mxu0 0.0
    %243 = vmatprep.subr.mxu0 0.0
    %244 = vmatpush1.msra.mxu0 0.0
    %245 = vmatprep.subr.mxu0 0.0
    %246 = vmatpush1.msra.mxu0 0.0
    %247 = vmatprep.subr.mxu0 0.0
    %248 = vmatpush1.msra.mxu0 0.0
    %249 = vmatprep.subr.mxu0 0.0
    %250 = vmatpush1.msra.mxu0 0.0
    %251 = vmatprep.mubr.f32.mxu0 0.0
    %252 = vmatmul.mubr.f32.gmra.mrb[0].mxu0 %v114
    %v253 = vpop.f32.mrb[0].mxu0
    %v254 = vadd.f32 %v108, %v253
    %v255 = vpop.f32.mrb[0].mxu0
    %256 = vdwg.mxu0
    %v257 = vmax.f32 %v183, 0.0
    %v258 = vmax.f32 %v185, 0.0
    %v259 = vmax.f32 %v254, 0.0
    %v260 = vld [vmem:[#allocation7] sm:$0xff]
    %v261 = vld [vmem:[#allocation7 + $0x8] sm:$0xff]
    %v262 = vld [vmem:[#allocation7 + $0x10] sm:$0xff]
    %v263 = vld [vmem:[#allocation7 + $0x18] sm:$0xff]
    %v264 = vld [vmem:[#allocation7 + $0x20] sm:$0xff]
    %v265 = vld [vmem:[#allocation7 + $0x28] sm:$0xff]
    %v266 = vld [vmem:[#allocation7 + $0x30] sm:$0xff]
    %v267 = vld [vmem:[#allocation7 + $0x38] sm:$0xff]
    %v268 = vld [vmem:[#allocation7 + $0x40] sm:$0xff]
    %v269 = vld [vmem:[#allocation7 + $0x48] sm:$0xff]
    %v270 = vld [vmem:[#allocation7 + $0x50] sm:$0xff]
    %v271 = vld [vmem:[#allocation7 + $0x58] sm:$0xff]
    %v272 = vld [vmem:[#allocation7 + $0x60] sm:$0xff]
    %v273 = vld [vmem:[#allocation7 + $0x68] sm:$0xff]
    %v274 = vld [vmem:[#allocation7 + $0x70] sm:$0xff]
    %v275 = vld [vmem:[#allocation7 + $0x78] sm:$0xff]
    %v276 = vld [vmem:[#allocation7 + $0x80] sm:$0xff]
    %v277 = vld [vmem:[#allocation7 + $0x88] sm:$0xff]
    %v278 = vld [vmem:[#allocation7 + $0x90] sm:$0xff]
    %v279 = vld [vmem:[#allocation7 + $0x98] sm:$0xff]
    %v280 = vld [vmem:[#allocation7 + $0xa0] sm:$0xff]
    %v281 = vld [vmem:[#allocation7 + $0xa8] sm:$0xff]
    %v282 = vld [vmem:[#allocation7 + $0xb0] sm:$0xff]
    %v283 = vld [vmem:[#allocation7 + $0xb8] sm:$0xff]
    %v284 = vld [vmem:[#allocation7 + $0xc0] sm:$0xff]
    %v285 = vld [vmem:[#allocation7 + $0xc8] sm:$0xff]
    %v286 = vld [vmem:[#allocation7 + $0xd0] sm:$0xff]
    %v287 = vld [vmem:[#allocation7 + $0xd8] sm:$0xff]
    %v288 = vld [vmem:[#allocation7 + $0xe0] sm:$0xff]
    %v289 = vld [vmem:[#allocation7 + $0xe8] sm:$0xff]
    %v290 = vld [vmem:[#allocation7 + $0xf0] sm:$0xff]
    %v291 = vld [vmem:[#allocation7 + $0xf8] sm:$0xff]
    %v292 = vld [vmem:[#allocation7 + $0x100] sm:$0xff]
    %v293 = vld [vmem:[#allocation7 + $0x108] sm:$0xff]
    %v294 = vld [vmem:[#allocation7 + $0x110] sm:$0xff]
    %v295 = vld [vmem:[#allocation7 + $0x118] sm:$0xff]
    %v296 = vld [vmem:[#allocation7 + $0x120] sm:$0xff]
    %v297 = vld [vmem:[#allocation7 + $0x128] sm:$0xff]
    %v298 = vld [vmem:[#allocation7 + $0x130] sm:$0xff]
    %v299 = vld [vmem:[#allocation7 + $0x138] sm:$0xff]
    %v300 = vld [vmem:[#allocation7 + $0x140] sm:$0xff]
    %v301 = vld [vmem:[#allocation7 + $0x148] sm:$0xff]
    %v302 = vld [vmem:[#allocation7 + $0x150] sm:$0xff]
    %v303 = vld [vmem:[#allocation7 + $0x158] sm:$0xff]
    %v304 = vld [vmem:[#allocation7 + $0x160] sm:$0xff]
    %v305 = vld [vmem:[#allocation7 + $0x168] sm:$0xff]
    %v306 = vld [vmem:[#allocation7 + $0x170] sm:$0xff]
    %v307 = vld [vmem:[#allocation7 + $0x178] sm:$0xff]
    %v308 = vld [vmem:[#allocation7 + $0x180] sm:$0xff]
    %v309 = vld [vmem:[#allocation7 + $0x188] sm:$0xff]
    %v310 = vld [vmem:[#allocation7 + $0x190] sm:$0xff]
    %v311 = vld [vmem:[#allocation7 + $0x198] sm:$0xff]
    %v312 = vld [vmem:[#allocation7 + $0x1a0] sm:$0xff]
    %v313 = vld [vmem:[#allocation7 + $0x1a8] sm:$0xff]
    %v314 = vld [vmem:[#allocation7 + $0x1b0] sm:$0xff]
    %v315 = vld [vmem:[#allocation7 + $0x1b8] sm:$0xff]
    %v316 = vld [vmem:[#allocation7 + $0x1c0] sm:$0xff]
    %v317 = vld [vmem:[#allocation7 + $0x1c8] sm:$0xff]
    %v318 = vld [vmem:[#allocation7 + $0x1d0] sm:$0xff]
    %v319 = vld [vmem:[#allocation7 + $0x1d8] sm:$0xff]
    %v320 = vld [vmem:[#allocation7 + $0x1e0] sm:$0xff]
    %v321 = vld [vmem:[#allocation7 + $0x1e8] sm:$0xff]
    %v322 = vld [vmem:[#allocation7 + $0x1f0] sm:$0xff]
    %v323 = vld [vmem:[#allocation7 + $0x1f8] sm:$0xff]
    %v324 = vld [vmem:[#allocation7 + $0x200] sm:$0xff]
    %v325 = vld [vmem:[#allocation7 + $0x208] sm:$0xff]
    %v326 = vld [vmem:[#allocation7 + $0x210] sm:$0xff]
    %v327 = vld [vmem:[#allocation7 + $0x218] sm:$0xff]
    %v328 = vld [vmem:[#allocation7 + $0x220] sm:$0xff]
    %v329 = vld [vmem:[#allocation7 + $0x228] sm:$0xff]
    %v330 = vld [vmem:[#allocation7 + $0x230] sm:$0xff]
    %v331 = vld [vmem:[#allocation7 + $0x238] sm:$0xff]
    %v332 = vld [vmem:[#allocation7 + $0x240] sm:$0xff]
    %v333 = vld [vmem:[#allocation7 + $0x248] sm:$0xff]
    %v334 = vld [vmem:[#allocation7 + $0x250] sm:$0xff]
    %v335 = vld [vmem:[#allocation7 + $0x258] sm:$0xff]
    %v336 = vld [vmem:[#allocation7 + $0x260] sm:$0xff]
    %v337 = vld [vmem:[#allocation7 + $0x268] sm:$0xff]
    %v338 = vld [vmem:[#allocation7 + $0x270] sm:$0xff]
    %v339 = vld [vmem:[#allocation7 + $0x278] sm:$0xff]
    %v340 = vld [vmem:[#allocation7 + $0x280] sm:$0xff]
    %v341 = vld [vmem:[#allocation7 + $0x288] sm:$0xff]
    %v342 = vld [vmem:[#allocation7 + $0x290] sm:$0xff]
    %v343 = vld [vmem:[#allocation7 + $0x298] sm:$0xff]
    %v344 = vld [vmem:[#allocation7 + $0x2a0] sm:$0xff]
    %v345 = vld [vmem:[#allocation7 + $0x2a8] sm:$0xff]
    %v346 = vld [vmem:[#allocation7 + $0x2b0] sm:$0xff]
    %v347 = vld [vmem:[#allocation7 + $0x2b8] sm:$0xff]
    %v348 = vld [vmem:[#allocation7 + $0x2c0] sm:$0xff]
    %v349 = vld [vmem:[#allocation7 + $0x2c8] sm:$0xff]
    %v350 = vld [vmem:[#allocation7 + $0x2d0] sm:$0xff]
    %v351 = vld [vmem:[#allocation7 + $0x2d8] sm:$0xff]
    %v352 = vld [vmem:[#allocation7 + $0x2e0] sm:$0xff]
    %v353 = vld [vmem:[#allocation7 + $0x2e8] sm:$0xff]
    %v354 = vld [vmem:[#allocation7 + $0x2f0] sm:$0xff]
    %v355 = vld [vmem:[#allocation7 + $0x2f8] sm:$0xff]
    %v356 = vld [vmem:[%s4] sm:$0x3]
    %v358 = vlaneseq
    %v359 = vshrl.u32 %v358, 7
    %v360 = vsub.s32 0, %v359
    %v361 = vrot.slane %v356, %v360
    %v362 = vlaneseq
    %v363 = vshrl.u32 %v362, 7
    %v364 = vsub.s32 1, %v363
    %v365 = vrot.slane %v356, %v364
    %368 = vmatprep.subr.mxu0 %v261
    %369 = vmatpush1.msra.mxu0 %v260
    %370 = vmatprep.subr.mxu0 %v263
    %371 = vmatpush1.msra.mxu0 %v262
    %372 = vmatprep.subr.mxu0 %v265
    %373 = vmatpush1.msra.mxu0 %v264
    %374 = vmatprep.subr.mxu0 %v267
    %375 = vmatpush1.msra.mxu0 %v266
    %376 = vmatprep.subr.mxu0 %v269
    %377 = vmatpush1.msra.mxu0 %v268
    %378 = vmatprep.subr.mxu0 %v271
    %379 = vmatpush1.msra.mxu0 %v270
    %380 = vmatprep.subr.mxu0 %v273
    %381 = vmatpush1.msra.mxu0 %v272
    %382 = vmatprep.subr.mxu0 %v275
    %383 = vmatpush1.msra.mxu0 %v274
    %384 = vmatprep.subr.mxu0 %v277
    %385 = vmatpush1.msra.mxu0 %v276
    %386 = vmatprep.subr.mxu0 %v279
    %387 = vmatpush1.msra.mxu0 %v278
    %388 = vmatprep.subr.mxu0 %v281
    %389 = vmatpush1.msra.mxu0 %v280
    %390 = vmatprep.subr.mxu0 %v283
    %391 = vmatpush1.msra.mxu0 %v282
    %392 = vmatprep.subr.mxu0 %v285
    %393 = vmatpush1.msra.mxu0 %v284
    %394 = vmatprep.subr.mxu0 %v287
    %395 = vmatpush1.msra.mxu0 %v286
    %396 = vmatprep.subr.mxu0 %v289
    %397 = vmatpush1.msra.mxu0 %v288
    %398 = vmatprep.subr.mxu0 %v291
    %399 = vmatpush1.msra.mxu0 %v290
    %400 = vmatprep.subr.mxu0 %v293
    %401 = vmatpush1.msra.mxu0 %v292
    %402 = vmatprep.subr.mxu0 %v295
    %403 = vmatpush1.msra.mxu0 %v294
    %404 = vmatprep.subr.mxu0 %v297
    %405 = vmatpush1.msra.mxu0 %v296
    %406 = vmatprep.subr.mxu0 %v299
    %407 = vmatpush1.msra.mxu0 %v298
    %408 = vmatprep.subr.mxu0 %v301
    %409 = vmatpush1.msra.mxu0 %v300
    %410 = vmatprep.subr.mxu0 %v303
    %411 = vmatpush1.msra.mxu0 %v302
    %412 = vmatprep.subr.mxu0 %v305
    %413 = vmatpush1.msra.mxu0 %v304
    %414 = vmatprep.subr.mxu0 %v307
    %415 = vmatpush1.msra.mxu0 %v306
    %416 = vmatprep.subr.mxu0 %v309
    %417 = vmatpush1.msra.mxu0 %v308
    %418 = vmatprep.subr.mxu0 %v311
    %419 = vmatpush1.msra.mxu0 %v310
    %420 = vmatprep.subr.mxu0 %v313
    %421 = vmatpush1.msra.mxu0 %v312
    %422 = vmatprep.subr.mxu0 %v315
    %423 = vmatpush1.msra.mxu0 %v314
    %424 = vmatprep.subr.mxu0 %v317
    %425 = vmatpush1.msra.mxu0 %v316
    %426 = vmatprep.subr.mxu0 %v319
    %427 = vmatpush1.msra.mxu0 %v318
    %428 = vmatprep.subr.mxu0 %v321
    %429 = vmatpush1.msra.mxu0 %v320
    %430 = vmatprep.subr.mxu0 %v323
    %431 = vmatpush1.msra.mxu0 %v322
    %432 = vmatprep.mubr.f32.mxu0 %v258
    %433 = vmatmul.mubr.f32.gmra.mrb[0].mxu0 %v257
    %v434 = vpop.f32.mrb[0].mxu0
    %v435 = vadd.f32 %v361, %v434
    %v436 = vpop.f32.mrb[0].mxu0
    %v437 = vadd.f32 %v365, %v436
    %438 = vdwg.mxu0
    %439 = vmatprep.subr.mxu0 %v325
    %440 = vmatpush1.msra.mxu0 %v324
    %441 = vmatprep.subr.mxu0 %v327
    %442 = vmatpush1.msra.mxu0 %v326
    %443 = vmatprep.subr.mxu0 %v329
    %444 = vmatpush1.msra.mxu0 %v328
    %445 = vmatprep.subr.mxu0 %v331
    %446 = vmatpush1.msra.mxu0 %v330
    %447 = vmatprep.subr.mxu0 %v333
    %448 = vmatpush1.msra.mxu0 %v332
    %449 = vmatprep.subr.mxu0 %v335
    %450 = vmatpush1.msra.mxu0 %v334
    %451 = vmatprep.subr.mxu0 %v337
    %452 = vmatpush1.msra.mxu0 %v336
    %453 = vmatprep.subr.mxu0 %v339
    %454 = vmatpush1.msra.mxu0 %v338
    %455 = vmatprep.subr.mxu0 %v341
    %456 = vmatpush1.msra.mxu0 %v340
    %457 = vmatprep.subr.mxu0 %v343
    %458 = vmatpush1.msra.mxu0 %v342
    %459 = vmatprep.subr.mxu0 %v345
    %460 = vmatpush1.msra.mxu0 %v344
    %461 = vmatprep.subr.mxu0 %v347
    %462 = vmatpush1.msra.mxu0 %v346
    %463 = vmatprep.subr.mxu0 %v349
    %464 = vmatpush1.msra.mxu0 %v348
    %465 = vmatprep.subr.mxu0 %v351
    %466 = vmatpush1.msra.mxu0 %v350
    %467 = vmatprep.subr.mxu0 %v353
    %468 = vmatpush1.msra.mxu0 %v352
    %469 = vmatprep.subr.mxu0 %v355
    %470 = vmatpush1.msra.mxu0 %v354
    %471 = vmatprep.subr.mxu0 0.0
    %472 = vmatpush1.msra.mxu0 0.0
    %473 = vmatprep.subr.mxu0 0.0
    %474 = vmatpush1.msra.mxu0 0.0
    %475 = vmatprep.subr.mxu0 0.0
    %476 = vmatpush1.msra.mxu0 0.0
    %477 = vmatprep.subr.mxu0 0.0
    %478 = vmatpush1.msra.mxu0 0.0
    %479 = vmatprep.subr.mxu0 0.0
    %480 = vmatpush1.msra.mxu0 0.0
    %481 = vmatprep.subr.mxu0 0.0
    %482 = vmatpush1.msra.mxu0 0.0
    %483 = vmatprep.subr.mxu0 0.0
    %484 = vmatpush1.msra.mxu0 0.0
    %485 = vmatprep.subr.mxu0 0.0
    %486 = vmatpush1.msra.mxu0 0.0
    %487 = vmatprep.subr.mxu0 0.0
    %488 = vmatpush1.msra.mxu0 0.0
    %489 = vmatprep.subr.mxu0 0.0
    %490 = vmatpush1.msra.mxu0 0.0
    %491 = vmatprep.subr.mxu0 0.0
    %492 = vmatpush1.msra.mxu0 0.0
    %493 = vmatprep.subr.mxu0 0.0
    %494 = vmatpush1.msra.mxu0 0.0
    %495 = vmatprep.subr.mxu0 0.0
    %496 = vmatpush1.msra.mxu0 0.0
    %497 = vmatprep.subr.mxu0 0.0
    %498 = vmatpush1.msra.mxu0 0.0
    %499 = vmatprep.subr.mxu0 0.0
    %500 = vmatpush1.msra.mxu0 0.0
    %501 = vmatprep.subr.mxu0 0.0
    %502 = vmatpush1.msra.mxu0 0.0
    %503 = vmatprep.mubr.f32.mxu0 0.0
    %504 = vmatmul.mubr.f32.gmra.mrb[0].mxu0 %v259
    %v505 = vpop.f32.mrb[0].mxu0
    %v506 = vadd.f32 %v435, %v505
    %v507 = vpop.f32.mrb[0].mxu0
    %v508 = vadd.f32 %v437, %v507
    %509 = vdwg.mxu0
    %v510 = vmax.f32 %v506, 0.0
    %v511 = vmax.f32 %v508, 0.0
    %v512 = vld [vmem:[#allocation8] sm:$0xff]
    %v513 = vld [vmem:[#allocation8 + $0x8] sm:$0xff]
    %v514 = vld [vmem:[#allocation8 + $0x10] sm:$0xff]
    %v515 = vld [vmem:[#allocation8 + $0x18] sm:$0xff]
    %v516 = vld [vmem:[#allocation8 + $0x20] sm:$0xff]
    %v517 = vld [vmem:[#allocation8 + $0x28] sm:$0xff]
    %v518 = vld [vmem:[#allocation8 + $0x30] sm:$0xff]
    %v519 = vld [vmem:[#allocation8 + $0x38] sm:$0xff]
    %v520 = vld [vmem:[#allocation8 + $0x40] sm:$0xff]
    %v521 = vld [vmem:[#allocation8 + $0x48] sm:$0xff]
    %v522 = vld [vmem:[#allocation8 + $0x50] sm:$0xff]
    %v523 = vld [vmem:[#allocation8 + $0x58] sm:$0xff]
    %v524 = vld [vmem:[#allocation8 + $0x60] sm:$0xff]
    %v525 = vld [vmem:[#allocation8 + $0x68] sm:$0xff]
    %v526 = vld [vmem:[#allocation8 + $0x70] sm:$0xff]
    %v527 = vld [vmem:[#allocation8 + $0x78] sm:$0xff]
    %v528 = vld [vmem:[#allocation8 + $0x80] sm:$0xff]
    %v529 = vld [vmem:[#allocation8 + $0x88] sm:$0xff]
    %v530 = vld [vmem:[#allocation8 + $0x90] sm:$0xff]
    %v531 = vld [vmem:[#allocation8 + $0x98] sm:$0xff]
    %v532 = vld [vmem:[#allocation8 + $0xa0] sm:$0xff]
    %v533 = vld [vmem:[#allocation8 + $0xa8] sm:$0xff]
    %v534 = vld [vmem:[#allocation8 + $0xb0] sm:$0xff]
    %v535 = vld [vmem:[#allocation8 + $0xb8] sm:$0xff]
    %v536 = vld [vmem:[#allocation8 + $0xc0] sm:$0xff]
    %v537 = vld [vmem:[#allocation8 + $0xc8] sm:$0xff]
    %v538 = vld [vmem:[#allocation8 + $0xd0] sm:$0xff]
    %v539 = vld [vmem:[#allocation8 + $0xd8] sm:$0xff]
    %v540 = vld [vmem:[#allocation8 + $0xe0] sm:$0xff]
    %v541 = vld [vmem:[#allocation8 + $0xe8] sm:$0xff]
    %v542 = vld [vmem:[#allocation8 + $0xf0] sm:$0xff]
    %v543 = vld [vmem:[#allocation8 + $0xf8] sm:$0xff]
    %v544 = vld [vmem:[%s6] sm:$0x1]
    %v546 = vlaneseq
    %v547 = vshrl.u32 %v546, 7
    %v548 = vsub.s32 0, %v547
    %v549 = vrot.slane %v544, %v548
    %551 = vmatprep.subr.mxu0 0.0
    %552 = vmatpush1.msra.mxu0 %v512
    %553 = vmatprep.subr.mxu0 0.0
    %554 = vmatpush1.msra.mxu0 %v513
    %555 = vmatprep.subr.mxu0 0.0
    %556 = vmatpush1.msra.mxu0 %v514
    %557 = vmatprep.subr.mxu0 0.0
    %558 = vmatpush1.msra.mxu0 %v515
    %559 = vmatprep.subr.mxu0 0.0
    %560 = vmatpush1.msra.mxu0 %v516
    %561 = vmatprep.subr.mxu0 0.0
    %562 = vmatpush1.msra.mxu0 %v517
    %563 = vmatprep.subr.mxu0 0.0
    %564 = vmatpush1.msra.mxu0 %v518
    %565 = vmatprep.subr.mxu0 0.0
    %566 = vmatpush1.msra.mxu0 %v519
    %567 = vmatprep.subr.mxu0 0.0
    %568 = vmatpush1.msra.mxu0 %v520
    %569 = vmatprep.subr.mxu0 0.0
    %570 = vmatpush1.msra.mxu0 %v521
    %571 = vmatprep.subr.mxu0 0.0
    %572 = vmatpush1.msra.mxu0 %v522
    %573 = vmatprep.subr.mxu0 0.0
    %574 = vmatpush1.msra.mxu0 %v523
    %575 = vmatprep.subr.mxu0 0.0
    %576 = vmatpush1.msra.mxu0 %v524
    %577 = vmatprep.subr.mxu0 0.0
    %578 = vmatpush1.msra.mxu0 %v525
    %579 = vmatprep.subr.mxu0 0.0
    %580 = vmatpush1.msra.mxu0 %v526
    %581 = vmatprep.subr.mxu0 0.0
    %582 = vmatpush1.msra.mxu0 %v527
    %583 = vmatprep.subr.mxu0 0.0
    %584 = vmatpush1.msra.mxu0 %v528
    %585 = vmatprep.subr.mxu0 0.0
    %586 = vmatpush1.msra.mxu0 %v529
    %587 = vmatprep.subr.mxu0 0.0
    %588 = vmatpush1.msra.mxu0 %v530
    %589 = vmatprep.subr.mxu0 0.0
    %590 = vmatpush1.msra.mxu0 %v531
    %591 = vmatprep.subr.mxu0 0.0
    %592 = vmatpush1.msra.mxu0 %v532
    %593 = vmatprep.subr.mxu0 0.0
    %594 = vmatpush1.msra.mxu0 %v533
    %595 = vmatprep.subr.mxu0 0.0
    %596 = vmatpush1.msra.mxu0 %v534
    %597 = vmatprep.subr.mxu0 0.0
    %598 = vmatpush1.msra.mxu0 %v535
    %599 = vmatprep.subr.mxu0 0.0
    %600 = vmatpush1.msra.mxu0 %v536
    %601 = vmatprep.subr.mxu0 0.0
    %602 = vmatpush1.msra.mxu0 %v537
    %603 = vmatprep.subr.mxu0 0.0
    %604 = vmatpush1.msra.mxu0 %v538
    %605 = vmatprep.subr.mxu0 0.0
    %606 = vmatpush1.msra.mxu0 %v539
    %607 = vmatprep.subr.mxu0 0.0
    %608 = vmatpush1.msra.mxu0 %v540
    %609 = vmatprep.subr.mxu0 0.0
    %610 = vmatpush1.msra.mxu0 %v541
    %611 = vmatprep.subr.mxu0 0.0
    %612 = vmatpush1.msra.mxu0 %v542
    %613 = vmatprep.subr.mxu0 0.0
    %614 = vmatpush1.msra.mxu0 %v543
    %615 = vmatprep.mubr.f32.mxu0 %v511
    %616 = vmatmul.mubr.f32.gmra.mrb[0].mxu0 %v510
    %v617 = vpop.f32.mrb[0].mxu0
    %v618 = vadd.f32 %v549, %v617
    %v619 = vpop.f32.mrb[0].mxu0
    %620 = vdwg.mxu0
    %vm621 = vcmask 80896
    %622 = vst.msk [vmem:[#allocation10] sm:$0xff] %vm621, %v618
    // Predicated region
    $region46: #{classifier_head.1} parent=1 // pred_check
      _
    $region47: #{classifier_head.1} parent=1 // pred_check_branch
      %624 = sbr.rel (0) target = $region49
    $region48: #{classifier_head.1} parent=1 // pred_region
      %s626 = ssub.s32 128, 32
      %627 = vsyncadd [#allocation4], %s626
      %s628 = sshll.u32 [#allocation10], 4
      %s629 = int_to_ptr.vmem [resolvable:$true] %s628
      %634 = dma.vmem_to_hbm [thread:$0]  %s629, 32, %s7, [#allocation4], 32, 32, 2
    $region49: #{classifier_head.1} parent=1 // pred_fallthru
      _
    // Predicated region
    $region50: #{classifier_head.1} parent=1 // pred_check
      _
    $region51: #{classifier_head.1} parent=1 // pred_check_branch
      %636 = sbr.rel (0) target = $region53
    $region52: #{classifier_head.1} parent=1 // pred_region
      %637 = dma.done [#allocation4], 128
    $region53: #{classifier_head.1} parent=1 // pred_fallthru
      _
    %638 = vsyncpa [#allocation3], 1
    %639 = vsyncpa [#allocation6], 1
    %640 = vsyncpa [#allocation9], 1
    %641 = vsyncpa [#allocation4], 1

</llo_original>
